<compile_context>
chip_gen: v7x
topology: tpu7x:2x2x1
jax: 0.10.0
libtpu: 0.0.40
codegen_flags: <defaults>
</compile_context>

<pallas_src>
import functools

import jax
import jax.numpy as jnp
from jax.experimental import pallas as pl
from jax.experimental.pallas import tpu as pltpu

KS = 3    # kernel_size
PAD = 1   # padding


def _build_padded_flat(xflat, H, W, dtype):
    """ZeroPad2d(PAD) of row-major-flattened images, built entirely in registers.

    xflat: (N, H*W) value. Returns an (N, (H+2*PAD)*(W+2*PAD)) value laid out so that a
    host-side reshape to (..., H+2*PAD, W+2*PAD) is a free contiguous view. Every output
    element is produced exactly once; the caller's single full-block store is the only write.
    """
    N = xflat.shape[0]
    Wp = W + 2 * PAD
    z_edge = jnp.zeros((N, PAD * Wp + PAD), dtype)   # top border + left pad of first row
    z_mid = jnp.zeros((N, 2 * PAD), dtype)           # right pad of row r + left pad of row r+1
    pieces = [z_edge]
    for r in range(H):
        pieces.append(xflat[:, r * W:(r + 1) * W].astype(dtype))
        pieces.append(z_mid if r + 1 < H else z_edge)  # last: right pad + bottom border
    # One N-ary concatenate along the lane axis; the lane shuffles ride the XLU/VPU slots,
    # which have plenty of slack in this memory-bound kernel.
    return jnp.concatenate(pieces, axis=-1)


def _pad_kernel(x_ref, pad_ref, *, H, W):
    # Default forward path: pure pad-copy (PyTorch discards the offsets conv result).
    pad_ref[...] = _build_padded_flat(x_ref[...], H, W, pad_ref.dtype)


def _pad_offsets_kernel(w_ref, xflat_ref, x3_ref, pad_ref, off_ref, *, B, C, H, W):
    # w_ref:     VMEM (KS*KS, C, 1, 1) f32   offsets-conv weights, one (C,1,1) vector per tap
    # xflat_ref: VMEM (B*C, H*W)             lane-dense input slab (for the padded output)
    # x3_ref:    VMEM (B*C, H, W)            spatial view of the same input (for the conv)
    # pad_ref:   VMEM (B*C, Hp*Wp)           forward output (flattened padded images)
    # off_ref:   VMEM (B, Ho, Wo)            the conv PyTorch computes then discards
    Ho, Wo = H - KS + 1, W - KS + 1

    # --- padded output: one lane-dense full-block store ---
    pad_ref[...] = _build_padded_flat(xflat_ref[...], H, W, pad_ref.dtype)

    # --- VALID 3x3 conv, 1 output channel, per batch (vectorised channel contraction) ---
    wv = w_ref[...].astype(jnp.float32)                       # (9, C, 1, 1), loaded once
    accs = [jnp.zeros((C, Ho, Wo), jnp.float32) for _ in range(B)]
    for kh in range(KS):
        for kw in range(KS):
            # One sliced load of the shifted window per tap (9 total, shared across batches).
            xs = x3_ref[:, kh:kh + Ho, kw:kw + Wo].astype(jnp.float32)   # (B*C, Ho, Wo)
            w_tap = wv[kh * KS + kw]                                     # (C, 1, 1)
            for b in range(B):
                # broadcast multiply over (Ho, Wo); accumulate per channel, reduce once below
                accs[b] = accs[b] + xs[b * C:(b + 1) * C] * w_tap
    for b in range(B):
        off_ref[b, :, :] = jnp.sum(accs[b], axis=0).astype(off_ref.dtype)


def _vmem_limit_bytes(*shaped):
    """Scoped-VMEM limit derived from the actual operand bytes, with generous headroom."""
    total = 0
    for shape, dtype in shaped:
        n = 1
        for d in shape:
            n *= int(d)
        total += n * jnp.dtype(dtype).itemsize
    # 8x headroom for layout padding / relayout temporaries; floor 8 MiB; cap at v7x's 64 MiB.
    return int(min(max(8 * total, 8 * 1024 * 1024), 64 * 1024 * 1024))


def dconv2d_forward(x, w_offsets=None, *, compute_offsets=False):
    """Pallas DConv2d.forward.

    Default (compute_offsets=False): returns the zero-padded tensor only — identical to what
    the PyTorch forward returns (its `offsets` conv result is discarded). At this size a plain
    jnp.pad under XLA is competitive; the Pallas path is kept so the pad can be fused with the
    offsets conv / downstream work.
    With compute_offsets=True: returns (padded_x, offsets) so the discarded computation can be
    reproduced and validated.
    """
    # TODO(synk): the PyTorch forward also does `print('aa')` when padding != 0; host stdout
    # side effects have no Pallas equivalent and are omitted.
    B, C, H, W = x.shape
    Hp, Wp = H + 2 * PAD, W + 2 * PAD
    x_flat = x.reshape(B * C, H * W)          # free contiguous view; (8, 256) = 2 x 128 lanes

    if not compute_offsets:
        vlim = _vmem_limit_bytes(((B * C, H * W), x.dtype), ((B * C, Hp * Wp), x.dtype))
        pad_flat = pl.pallas_call(
            functools.partial(_pad_kernel, H=H, W=W),
            out_shape=jax.ShapeDtypeStruct((B * C, Hp * Wp), x.dtype),
            in_specs=[pl.BlockSpec(memory_space=pltpu.MemorySpace.VMEM)],
            out_specs=pl.BlockSpec(memory_space=pltpu.MemorySpace.VMEM),
            compiler_params=pltpu.CompilerParams(vmem_limit_bytes=vlim),
        )(x_flat)
        return pad_flat.reshape(B, C, Hp, Wp)   # free contiguous view

    assert w_offsets is not None and w_offsets.shape == (1, C, KS, KS)
    Ho, Wo = H - KS + 1, W - KS + 1
    # (1, C, KS, KS) OIHW -> (KS*KS, C, 1, 1): one (C,1,1) weight vector per tap so the
    # in-kernel channel contraction is a single broadcast multiply (no scalar SMEM loads).
    w_taps = jnp.transpose(w_offsets[0], (1, 2, 0)).reshape(KS * KS, C, 1, 1).astype(jnp.float32)
    x3 = x.reshape(B * C, H, W)

    vlim = _vmem_limit_bytes(
        (w_taps.shape, w_taps.dtype),
        ((B * C, H * W), x.dtype), ((B * C, H, W), x.dtype),
        ((B * C, Hp * Wp), x.dtype), ((B, Ho, Wo), x.dtype))
    pad_flat, off = pl.pallas_call(
        functools.partial(_pad_offsets_kernel, B=B, C=C, H=H, W=W),
        out_shape=(
            jax.ShapeDtypeStruct((B * C, Hp * Wp), x.dtype),
            jax.ShapeDtypeStruct((B, Ho, Wo), x.dtype),
        ),
        in_specs=[pl.BlockSpec(memory_space=pltpu.MemorySpace.VMEM)] * 3,
        out_specs=(
            pl.BlockSpec(memory_space=pltpu.MemorySpace.VMEM),
            pl.BlockSpec(memory_space=pltpu.MemorySpace.VMEM),
        ),
        compiler_params=pltpu.CompilerParams(vmem_limit_bytes=vlim),
    )(w_taps, x_flat, x3)
    return pad_flat.reshape(B, C, Hp, Wp), off.reshape(B, 1, Ho, Wo)


if __name__ == "__main__":
    key = jax.random.PRNGKey(0)
    k1, k2, k3 = jax.random.split(key, 3)

    B, Cin, Cout, H, W = 2, 4, 8, 16, 16

    x = jax.random.normal(k1, (B, Cin, H, W), dtype=jnp.float32)
    # self.offsets = nn.Conv2d(Cin, 1, kernel_size=3, stride=1, bias=None) -> weight (1, Cin, 3, 3)
    w_offsets = 0.1 * jax.random.normal(k2, (1, Cin, KS, KS), dtype=jnp.float32)
    # self.conv_kernel is initialized by the module but never used inside forward().
    w_conv_kernel = 0.1 * jax.random.normal(k3, (Cout, Cin, KS, KS), dtype=jnp.float32)

    # Default (fast) forward path: pure pad-copy, matching the module's returned value.
    pad_out = jax.block_until_ready(dconv2d_forward(x))

    # Fidelity path: also reproduce the discarded offsets conv, and validate it.
    pad_out2, off_out = jax.block_until_ready(
        dconv2d_forward(x, w_offsets, compute_offsets=True))

    # --- reference checks (pure JAX) ---
    ref_pad = jnp.pad(x, ((0, 0), (0, 0), (PAD, PAD), (PAD, PAD)))
    ref_off = jax.lax.conv_general_dilated(
        x, w_offsets, window_strides=(1, 1), padding="VALID",
        dimension_numbers=("NCHW", "OIHW", "NCHW"))

    assert pad_out.shape == (B, Cin, H + 2 * PAD, W + 2 * PAD)
    assert pad_out.dtype == x.dtype
    assert jnp.allclose(pad_out, ref_pad, atol=1e-6, rtol=1e-6), "padding mismatch (default path)"
    assert jnp.allclose(pad_out2, ref_pad, atol=1e-6, rtol=1e-6), "padding mismatch (offsets path)"
    assert off_out.shape == (B, 1, H - KS + 1, W - KS + 1)
    assert jnp.allclose(off_out, ref_off, atol=1e-4, rtol=1e-4), "offsets conv mismatch"

    print("KERNEL_OK")
</pallas_src>

<mosaic_0001>
module attributes {stable_mosaic.version = 11 : i64} {
  func.func @_pad_kernel(%arg0: memref<8x256xf32, #tpu.memory_space<vmem>>, %arg1: memref<8x324xf32, #tpu.memory_space<vmem>>) attributes {dimension_semantics = [], scalar_prefetch = 0 : i64, scratch_operands = 0 : i64, tpu.core_type = #tpu.core_type<tc>} {
    %c0 = arith.constant 0 : index
    %c0_0 = arith.constant 0 : index
    %0 = vector.load %arg0[%c0, %c0_0] : memref<8x256xf32, #tpu.memory_space<vmem>>, vector<8x256xf32>
    %cst = arith.constant 0.000000e+00 : f32
    %1 = vector.broadcast %cst : f32 to vector<8x19xf32>
    %cst_1 = arith.constant 0.000000e+00 : f32
    %2 = vector.broadcast %cst_1 : f32 to vector<8x2xf32>
    %3 = vector.extract_strided_slice %0 {offsets = [0, 0], sizes = [8, 16], strides = [1, 1]} : vector<8x256xf32> to vector<8x16xf32>
    %4 = vector.extract_strided_slice %0 {offsets = [0, 16], sizes = [8, 16], strides = [1, 1]} : vector<8x256xf32> to vector<8x16xf32>
    %5 = vector.extract_strided_slice %0 {offsets = [0, 32], sizes = [8, 16], strides = [1, 1]} : vector<8x256xf32> to vector<8x16xf32>
    %6 = vector.extract_strided_slice %0 {offsets = [0, 48], sizes = [8, 16], strides = [1, 1]} : vector<8x256xf32> to vector<8x16xf32>
    %7 = vector.extract_strided_slice %0 {offsets = [0, 64], sizes = [8, 16], strides = [1, 1]} : vector<8x256xf32> to vector<8x16xf32>
    %8 = vector.extract_strided_slice %0 {offsets = [0, 80], sizes = [8, 16], strides = [1, 1]} : vector<8x256xf32> to vector<8x16xf32>
    %9 = vector.extract_strided_slice %0 {offsets = [0, 96], sizes = [8, 16], strides = [1, 1]} : vector<8x256xf32> to vector<8x16xf32>
    %10 = vector.extract_strided_slice %0 {offsets = [0, 112], sizes = [8, 16], strides = [1, 1]} : vector<8x256xf32> to vector<8x16xf32>
    %11 = vector.extract_strided_slice %0 {offsets = [0, 128], sizes = [8, 16], strides = [1, 1]} : vector<8x256xf32> to vector<8x16xf32>
    %12 = vector.extract_strided_slice %0 {offsets = [0, 144], sizes = [8, 16], strides = [1, 1]} : vector<8x256xf32> to vector<8x16xf32>
    %13 = vector.extract_strided_slice %0 {offsets = [0, 160], sizes = [8, 16], strides = [1, 1]} : vector<8x256xf32> to vector<8x16xf32>
    %14 = vector.extract_strided_slice %0 {offsets = [0, 176], sizes = [8, 16], strides = [1, 1]} : vector<8x256xf32> to vector<8x16xf32>
    %15 = vector.extract_strided_slice %0 {offsets = [0, 192], sizes = [8, 16], strides = [1, 1]} : vector<8x256xf32> to vector<8x16xf32>
    %16 = vector.extract_strided_slice %0 {offsets = [0, 208], sizes = [8, 16], strides = [1, 1]} : vector<8x256xf32> to vector<8x16xf32>
    %17 = vector.extract_strided_slice %0 {offsets = [0, 224], sizes = [8, 16], strides = [1, 1]} : vector<8x256xf32> to vector<8x16xf32>
    %18 = vector.extract_strided_slice %0 {offsets = [0, 240], sizes = [8, 16], strides = [1, 1]} : vector<8x256xf32> to vector<8x16xf32>
    %19 = tpu.concatenate %1, %3, %2, %4, %2, %5, %2, %6, %2, %7, %2, %8, %2, %9, %2, %10 in 1 : vector<8x19xf32>, vector<8x16xf32>, vector<8x2xf32>, vector<8x16xf32>, vector<8x2xf32>, vector<8x16xf32>, vector<8x2xf32>, vector<8x16xf32>, vector<8x2xf32>, vector<8x16xf32>, vector<8x2xf32>, vector<8x16xf32>, vector<8x2xf32>, vector<8x16xf32>, vector<8x2xf32>, vector<8x16xf32> -> vector<8x161xf32>
    %20 = tpu.concatenate %2, %11, %2, %12, %2, %13, %2, %14, %2, %15, %2, %16, %2, %17, %2, %18 in 1 : vector<8x2xf32>, vector<8x16xf32>, vector<8x2xf32>, vector<8x16xf32>, vector<8x2xf32>, vector<8x16xf32>, vector<8x2xf32>, vector<8x16xf32>, vector<8x2xf32>, vector<8x16xf32>, vector<8x2xf32>, vector<8x16xf32>, vector<8x2xf32>, vector<8x16xf32>, vector<8x2xf32>, vector<8x16xf32> -> vector<8x144xf32>
    %21 = tpu.concatenate %19, %20, %1 in 1 : vector<8x161xf32>, vector<8x144xf32>, vector<8x19xf32> -> vector<8x324xf32>
    %c0_2 = arith.constant 0 : index
    %c0_3 = arith.constant 0 : index
    %22 = vector.load %arg1[%c0_2, %c0_3] : memref<8x324xf32, #tpu.memory_space<vmem>>, vector<8x324xf32>
    tpu.vector_store %arg1[%c0_2, %c0_3], %21 {strides = array<i32>} : memref<8x324xf32, #tpu.memory_space<vmem>>, vector<8x324xf32>,
    return
  }
}

</mosaic_0001>

<llo_original>
// kernel: tpu_custom_call.1
$region0: #{tpu_custom_call.1}
  #allocation0 [shape = 'u32[]', space=smem, size = 0x4, offset = 0x4, fixed_abs, tag = 'smem constant byte address 0x4 - core index']
  #allocation1 [shape = 'u32[144,128]{1,0:T(1,128)}', space=vmem, size = 0x12000, scoped, tag = 'internal scratch']
  %s0 = inlined_call_operand.hbm [shape: f32[8,256], index: 0, kind: input, shape index: {}]
  %s1 = inlined_call_operand.hbm [shape: f32[8,324], index: 1, kind: output, shape index: {}]
  %s2 = sld [smem:[#allocation0]]
  $region18: #{tpu_custom_call.1} parent=0
    _
  %s4 = ssub.s32 1, %s2
  %s5 = scalar_select 0, %s4, %s2
  $region1: #{tpu_custom_call.1} parent=0
    #allocation2 [shape = 'u8[8192]{0}', space=vmem, size = 0x2000, scoped, tag = 'input window, operand 0, single buffered']
    #allocation3 [shape = 's32[1]{0}', space=sflag, size = 0x4, scoped, tag = 'scoped memory for tpu_custom_call.1']
    #allocation4 [shape = 's32[1]{0}', space=sflag, size = 0x4, scoped, tag = 'scoped memory for tpu_custom_call.1']
    #allocation5 [shape = 'u8[12288]{0}', space=vmem, size = 0x3000, scoped, tag = 'output window, operand 0, single buffered']
    %6 = vsyncpa [#allocation3], 0
    %7 = vsyncpa [#allocation4], 0
    // Predicated region
    $region2: #{tpu_custom_call.1} parent=1 // pred_check
      _
    $region3: #{tpu_custom_call.1} parent=1 // pred_check_branch
      %9 = sbr.rel (0) target = $region5
    $region4: #{tpu_custom_call.1} parent=1 // pred_region
      %s11 = ssub.s32 256, 256
      %12 = vsyncadd [#allocation3], %s11
      %s14 = sshll.u32 [#allocation2], 4
      %s15 = int_to_ptr.vmem [resolvable:$true] %s14
      %17 = dma.hbm_to_vmem [thread:$0]  %s0, 256, %s15, [#allocation3]
    $region5: #{tpu_custom_call.1} parent=1 // pred_fallthru
      _
    // Predicated region
    $region6: #{tpu_custom_call.1} parent=1 // pred_check
      _
    $region7: #{tpu_custom_call.1} parent=1 // pred_check_branch
      %19 = sbr.rel (0) target = $region9
    $region8: #{tpu_custom_call.1} parent=1 // pred_region
      %20 = dma.done [#allocation3], 256
    $region9: #{tpu_custom_call.1} parent=1 // pred_fallthru
      _
    %v21 = vld [vmem:[#allocation2] sm:$0xff]
    %v22 = vld [vmem:[#allocation2 + $0x8] sm:$0xff]
    %24 = vrot.lane.b32.xlu0 %v21, 19
    %v25 = vpop.permute.xlu0 %24
    %27 = vrot.lane.b32.xlu0 %v21, 21
    %v28 = vpop.permute.xlu0 %27
    %30 = vrot.lane.b32.xlu0 %v21, 23
    %v31 = vpop.permute.xlu0 %30
    %33 = vrot.lane.b32.xlu0 %v21, 25
    %v34 = vpop.permute.xlu0 %33
    %36 = vrot.lane.b32.xlu0 %v21, 27
    %v37 = vpop.permute.xlu0 %36
    %39 = vrot.lane.b32.xlu0 %v21, 29
    %v40 = vpop.permute.xlu0 %39
    %42 = vrot.lane.b32.xlu0 %v21, 31
    %v43 = vpop.permute.xlu0 %42
    %45 = vrot.lane.b32.xlu0 %v21, 33
    %v46 = vpop.permute.xlu0 %45
    %vm48 = vcmask 154624
    %v49 = vsel %vm48, 0.0, %v25
    %vm50 = vcmask 285696
    %v51 = vsel %vm50, %v49, 0.0
    %vm52 = vcmask 302080
    %v53 = vsel %vm52, %v51, %v28
    %vm54 = vcmask 433152
    %v55 = vsel %vm54, %v53, 0.0
    %vm56 = vcmask 449536
    %v57 = vsel %vm56, %v55, %v31
    %vm58 = vcmask 580608
    %v59 = vsel %vm58, %v57, 0.0
    %vm60 = vcmask 596992
    %v61 = vsel %vm60, %v59, %v34
    %vm62 = vcmask 728064
    %v63 = vsel %vm62, %v61, 0.0
    %vm64 = vcmask 744448
    %v65 = vsel %vm64, %v63, %v37
    %vm66 = vcmask 875520
    %v67 = vsel %vm66, %v65, 0.0
    %vm68 = vcmask 891904
    %v69 = vsel %vm68, %v67, %v40
    %vm70 = vcmask 1022976
    %v71 = vsel %vm70, %v69, 0.0
    %vm72 = vcmask 1039360
    %v73 = vsel %vm72, %v71, %v43
    %vm74 = vcmask 121856
    %v75 = vsel %vm74, %v43, 0.0
    %vm76 = vcmask 138240
    %v77 = vsel %vm76, %v75, %v46
    %79 = vrot.lane.b32.xlu0 %v22, 2
    %v80 = vpop.permute.xlu0 %79
    %82 = vrot.lane.b32.xlu0 %v22, 4
    %v83 = vpop.permute.xlu0 %82
    %85 = vrot.lane.b32.xlu0 %v22, 6
    %v86 = vpop.permute.xlu0 %85
    %88 = vrot.lane.b32.xlu0 %v22, 8
    %v89 = vpop.permute.xlu0 %88
    %91 = vrot.lane.b32.xlu0 %v22, 10
    %v92 = vpop.permute.xlu0 %91
    %94 = vrot.lane.b32.xlu0 %v22, 12
    %v95 = vpop.permute.xlu0 %94
    %97 = vrot.lane.b32.xlu0 %v22, 14
    %v98 = vpop.permute.xlu0 %97
    %100 = vrot.lane.b32.xlu0 %v22, 16
    %v101 = vpop.permute.xlu0 %100
    %vm102 = vcmask 15360
    %v103 = vsel %vm102, 0.0, %v80
    %vm104 = vcmask 146432
    %v105 = vsel %vm104, %v103, 0.0
    %vm106 = vcmask 162816
    %v107 = vsel %vm106, %v105, %v83
    %vm108 = vcmask 293888
    %v109 = vsel %vm108, %v107, 0.0
    %vm110 = vcmask 310272
    %v111 = vsel %vm110, %v109, %v86
    %vm112 = vcmask 441344
    %v113 = vsel %vm112, %v111, 0.0
    %vm114 = vcmask 457728
    %v115 = vsel %vm114, %v113, %v89
    %vm116 = vcmask 588800
    %v117 = vsel %vm116, %v115, 0.0
    %vm118 = vcmask 605184
    %v119 = vsel %vm118, %v117, %v92
    %vm120 = vcmask 736256
    %v121 = vsel %vm120, %v119, 0.0
    %vm122 = vcmask 752640
    %v123 = vsel %vm122, %v121, %v95
    %vm124 = vcmask 883712
    %v125 = vsel %vm124, %v123, 0.0
    %vm126 = vcmask 900096
    %v127 = vsel %vm126, %v125, %v98
    %vm128 = vcmask 1031168
    %v129 = vsel %vm128, %v127, 0.0
    %131 = vrot.lane.b32.xlu0 %v129, 33
    %v132 = vpop.permute.xlu0 %131
    %133 = vrot.lane.b32.xlu0 %v101, 33
    %v134 = vpop.permute.xlu0 %133
    %vm135 = vcmask 269312
    %v136 = vsel %vm135, %v132, %v134
    %v139 = vsel %vm135, %v77, %v132
    %vm140 = vcmask 400384
    %v141 = vsel %vm140, %v136, 0.0
    %142 = vst [vmem:[#allocation5] sm:$0xff] %v73
    %143 = vst [vmem:[#allocation5 + $0x8] sm:$0xff] %v139
    %vm144 = vcmask 556032
    %145 = vst.msk [vmem:[#allocation5 + $0x10] sm:$0xff] %vm144, %v141
    // Predicated region
    $region10: #{tpu_custom_call.1} parent=1 // pred_check
      _
    $region11: #{tpu_custom_call.1} parent=1 // pred_check_branch
      %147 = sbr.rel (0) target = $region13
    $region12: #{tpu_custom_call.1} parent=1 // pred_region
      %s149 = ssub.s32 384, 384
      %150 = vsyncadd [#allocation4], %s149
      %s152 = sshll.u32 [#allocation5], 4
      %s153 = int_to_ptr.vmem [resolvable:$true] %s152
      %155 = dma.vmem_to_hbm [thread:$0]  %s153, 384, %s1, [#allocation4]
    $region13: #{tpu_custom_call.1} parent=1 // pred_fallthru
      _
    // Predicated region
    $region14: #{tpu_custom_call.1} parent=1 // pred_check
      _
    $region15: #{tpu_custom_call.1} parent=1 // pred_check_branch
      %157 = sbr.rel (0) target = $region17
    $region16: #{tpu_custom_call.1} parent=1 // pred_region
      %158 = dma.done [#allocation4], 384
    $region17: #{tpu_custom_call.1} parent=1 // pred_fallthru
      _
    %159 = vsyncpa [#allocation3], 1
    %160 = vsyncpa [#allocation4], 1

</llo_original>
